<compile_context>
chip_gen: v6e
topology: v6e:2x2x1
jax: 0.10.0
libtpu: 0.0.40
codegen_flags: <defaults>
</compile_context>

<pallas_src>
import jax
import jax.numpy as jnp
from jax.experimental import pallas as pl
from jax.experimental.pallas import tpu as pltpu


_LANE_CANDIDATES = (512, 256, 128)   # lane-dense widths (multiples of 128)
_MAX_TILE_BYTES = 4 * 1024 * 1024    # 4 MiB blocks -> 16 MiB total buffering
_SUBLANE = {4: 8, 2: 16, 1: 32}      # min sublane multiple per dtype itemsize


def _api_roundtrip_kernel(x_ref, o_ref):
    # TODO(synk): requests.post(endpoint, json=...) has no Pallas equivalent;
    # the remote transform is modeled as an on-device identity pass-through.
    o_ref[...] = x_ref[...]


def _copy_2d(x2d, *, tile_rows, bytes_accessed):
    rows, cols = x2d.shape
    grid = (pl.cdiv(rows, tile_rows),)
    return pl.pallas_call(
        _api_roundtrip_kernel,
        out_shape=jax.ShapeDtypeStruct((rows, cols), x2d.dtype),
        grid=grid,
        in_specs=[pl.BlockSpec((tile_rows, cols), lambda i: (i, 0))],
        out_specs=pl.BlockSpec((tile_rows, cols), lambda i: (i, 0)),
        compiler_params=pltpu.CompilerParams(
            dimension_semantics=("parallel",),
            vmem_limit_bytes=32 * 1024 * 1024,
        ),
        cost_estimate=pl.CostEstimate(
            flops=0, transcendentals=0, bytes_accessed=bytes_accessed),
    )(x2d)


def api_call_wrapper_forward(x, endpoint="local://identity", retries=3):
    """Pallas stand-in for APICallWrapper.forward.

    `endpoint` / `retries` are kept for signature parity; the retry loop is
    control flow around a network call and is a no-op here (the kernel always
    "succeeds" on the first try).
    """
    del endpoint, retries

    orig_shape = x.shape
    total = x.size
    if total == 0:
        return x

    itemsize = jnp.dtype(x.dtype).itemsize
    sublane = _SUBLANE.get(itemsize, 8)

    flat = x.reshape(-1)  # metadata-only for a contiguous array

    # Pick a lane-dense width that divides `total` so the common case needs
    # neither a pre-kernel pad nor a post-kernel slice (each of those is an
    # extra full-array HBM pass around a purely bandwidth-bound kernel).
    cols = 0
    for c in _LANE_CANDIDATES:
        if total % c == 0:
            cols = c
            break

    padded_total = total
    if cols == 0:
        # Truly ragged size (not a multiple of 128): rare; pad only to the
        # next multiple of 128 and slice the tail back off afterwards.
        cols = 128
        padded_total = ((total + cols - 1) // cols) * cols
        flat = jnp.pad(flat, (0, padded_total - total))

    rows = padded_total // cols

    # Tile sizing: ~4 MiB blocks, dtype-aware sublane alignment.  If the
    # whole array would fit a single block but spans >= 2 sublane tiles,
    # split it into >= 2 grid steps so the pipeline (and v7x's two
    # TensorCores on the "parallel" axis) has more than one unit of work.
    max_tile_rows = max(
        sublane, (_MAX_TILE_BYTES // (cols * itemsize)) // sublane * sublane)
    if rows > max_tile_rows:
        tile_rows = max_tile_rows
    elif rows >= 2 * sublane:
        half = pl.cdiv(rows, 2)
        tile_rows = ((half + sublane - 1) // sublane) * sublane
    else:
        tile_rows = rows  # single full-extent block (no sublane constraint)

    out2d = _copy_2d(
        flat.reshape(rows, cols),
        tile_rows=tile_rows,
        bytes_accessed=2 * total * itemsize,
    )

    out_flat = out2d.reshape(-1)
    if padded_total != total:
        out_flat = out_flat[:total]
    return out_flat.reshape(orig_shape)


if __name__ == "__main__":
    key = jax.random.PRNGKey(0)
    # small NCHW input: batch=2, channels=4, spatial=16x16
    x = jax.random.normal(key, (2, 4, 16, 16), dtype=jnp.float32)

    y = api_call_wrapper_forward(x)
    jax.block_until_ready(y)

    assert y.shape == x.shape and y.dtype == x.dtype
    assert bool(jnp.allclose(y, x))
    print("KERNEL_OK")
</pallas_src>

<mosaic_0001>
module attributes {stable_mosaic.version = 11 : i64} {
  func.func @_api_roundtrip_kernel(%arg0: i32, %arg1: memref<4x512xf32, #tpu.memory_space<vmem>>, %arg2: memref<4x512xf32, #tpu.memory_space<vmem>>) attributes {dimension_semantics = [#tpu.dimension_semantics<parallel>], iteration_bounds = array<i64: 1>, scalar_prefetch = 0 : i64, scratch_operands = 0 : i64, tpu.core_type = #tpu.core_type<tc>, window_params = [{transform_indices = @transform_0, window_bounds = array<i64: 4, 512>}, {transform_indices = @transform_1, window_bounds = array<i64: 4, 512>}]} {
    %c0 = arith.constant 0 : index
    %c0_0 = arith.constant 0 : index
    %0 = vector.load %arg1[%c0, %c0_0] : memref<4x512xf32, #tpu.memory_space<vmem>>, vector<4x512xf32>
    %c0_1 = arith.constant 0 : index
    %c0_2 = arith.constant 0 : index
    %1 = vector.load %arg2[%c0_1, %c0_2] : memref<4x512xf32, #tpu.memory_space<vmem>>, vector<4x512xf32>
    tpu.vector_store %arg2[%c0_1, %c0_2], %0 {strides = array<i32>} : memref<4x512xf32, #tpu.memory_space<vmem>>, vector<4x512xf32>,
    return
  }
  func.func @transform_0(%arg0: i32) -> (i32, i32) {
    %c0_i32 = arith.constant 0 : i32
    %c0_i32_0 = arith.constant 0 : i32
    return %arg0, %c0_i32 : i32, i32
  }
  func.func @transform_1(%arg0: i32) -> (i32, i32) {
    %c0_i32 = arith.constant 0 : i32
    %c0_i32_0 = arith.constant 0 : i32
    return %arg0, %c0_i32 : i32, i32
  }
}

</mosaic_0001>

<llo_original>
// kernel: tpu_custom_call.1
$region0: #{tpu_custom_call.1}
  #allocation0 [shape = 'u32[]', space=smem, size = 0x4, offset = 0x4, fixed_abs, tag = 'smem constant byte address 0x4 - core index']
  #allocation1 [shape = 'u32[144,128]{1,0:T(1,128)}', space=vmem, size = 0x12000, scoped, tag = 'internal scratch']
  %s0 = inlined_call_operand.hbm [shape: f32[4,512], index: 0, kind: input, shape index: {}]
  %s1 = inlined_call_operand.hbm [shape: f32[4,512], index: 1, kind: output, shape index: {}]
  %s2 = sld [smem:[#allocation0]]
  $region18: #{tpu_custom_call.1} parent=0
    _
  %s4 = ssub.s32 1, %s2
  %s5 = scalar_select 0, %s4, %s2
  $region1: #{tpu_custom_call.1} parent=0
    #allocation2 [shape = 'u8[8192]{0}', space=vmem, size = 0x2000, scoped, tag = 'input window, operand 0, single buffered']
    #allocation3 [shape = 's32[1]{0}', space=sflag, size = 0x4, scoped, tag = 'scoped memory for tpu_custom_call.1']
    #allocation4 [shape = 's32[1]{0}', space=sflag, size = 0x4, scoped, tag = 'scoped memory for tpu_custom_call.1']
    #allocation5 [shape = 'u8[8192]{0}', space=vmem, size = 0x2000, scoped, tag = 'output window, operand 0, single buffered']
    %6 = vsyncpa [#allocation3], 0
    %7 = vsyncpa [#allocation4], 0
    // Predicated region
    $region2: #{tpu_custom_call.1} parent=1 // pred_check
      _
    $region3: #{tpu_custom_call.1} parent=1 // pred_check_branch
      %9 = sbr.rel (0) target = $region5
    $region4: #{tpu_custom_call.1} parent=1 // pred_region
      %s11 = ssub.s32 256, 256
      %12 = vsyncadd [#allocation3], %s11
      %s14 = sshll.u32 [#allocation2], 4
      %s15 = int_to_ptr.vmem [resolvable:$true] %s14
      %17 = dma.hbm_to_vmem [thread:$0]  %s0, 256, %s15, [#allocation3]
    $region5: #{tpu_custom_call.1} parent=1 // pred_fallthru
      _
    // Predicated region
    $region6: #{tpu_custom_call.1} parent=1 // pred_check
      _
    $region7: #{tpu_custom_call.1} parent=1 // pred_check_branch
      %19 = sbr.rel (0) target = $region9
    $region8: #{tpu_custom_call.1} parent=1 // pred_region
      %20 = dma.done [#allocation3], 256
    $region9: #{tpu_custom_call.1} parent=1 // pred_fallthru
      _
    %v21 = vld [vmem:[#allocation2] sm:$0xff]
    %v22 = vld [vmem:[#allocation2 + $0x8] sm:$0xff]
    %23 = vst [vmem:[#allocation5] sm:$0xff] %v21
    %24 = vst [vmem:[#allocation5 + $0x8] sm:$0xff] %v22
    // Predicated region
    $region10: #{tpu_custom_call.1} parent=1 // pred_check
      _
    $region11: #{tpu_custom_call.1} parent=1 // pred_check_branch
      %26 = sbr.rel (0) target = $region13
    $region12: #{tpu_custom_call.1} parent=1 // pred_region
      %s28 = ssub.s32 256, 256
      %29 = vsyncadd [#allocation4], %s28
      %s31 = sshll.u32 [#allocation5], 4
      %s32 = int_to_ptr.vmem [resolvable:$true] %s31
      %34 = dma.vmem_to_hbm [thread:$0]  %s32, 256, %s1, [#allocation4]
    $region13: #{tpu_custom_call.1} parent=1 // pred_fallthru
      _
    // Predicated region
    $region14: #{tpu_custom_call.1} parent=1 // pred_check
      _
    $region15: #{tpu_custom_call.1} parent=1 // pred_check_branch
      %36 = sbr.rel (0) target = $region17
    $region16: #{tpu_custom_call.1} parent=1 // pred_region
      %37 = dma.done [#allocation4], 256
    $region17: #{tpu_custom_call.1} parent=1 // pred_fallthru
      _
    %38 = vsyncpa [#allocation3], 1
    %39 = vsyncpa [#allocation4], 1

</llo_original>
